<compile_context>
chip_gen: v7x
topology: tpu7x:2x2x1
jax: 0.10.0
libtpu: 0.0.40
codegen_flags: <defaults>
</compile_context>

<pallas_src>
import functools
import math

import jax
import jax.numpy as jnp
from jax.experimental import pallas as pl
from jax.experimental.pallas import tpu as pltpu


FEAT_CHANNELS = 32
DESCRIPTOR_DIM = 32
CELL = 8            # SuperPoint cell size (H/8, W/8 feature map)
TOPK = 16           # fixed-K sparse keypoints (PyTorch version is ragged)
N_DET = 65          # 64 cells + dustbin
N_HEAD = 128        # fused head width: [desc(32) | det(65) | pad(31)]

# Packed, lane-dense extractor output slab (one (tm, 256) f32 store per tile).
SLAB_W = 256
_OFF_FEATS = 0
_OFF_RAW = FEAT_CHANNELS                                  # 32
_OFF_COARSE = FEAT_CHANNELS + DESCRIPTOR_DIM              # 64
_OFF_LOGITS = FEAT_CHANNELS + 2 * DESCRIPTOR_DIM          # 96
_OFF_PROB = _OFF_LOGITS + N_DET                           # 161
_SLAB_USED = _OFF_PROB + N_DET                            # 226


def _vmem_capacity_bytes():
    """Best-effort trace-time VMEM capacity query; conservative v7x fallback."""
    try:
        return int(pltpu.get_tpu_info().vmem_capacity_bytes)
    except Exception:
        return 64 * 1024 * 1024


# ----------------------------------------------------------------------------
# Fused extractor kernel: backbone + fused heads + softmax + L2-norm epilogues
# Single lane-dense packed output slab.
# ----------------------------------------------------------------------------

def _fused_extractor_kernel(x_ref, wbb_ref, bbb_ref, wh_ref, bh_ref, slab_ref):
    x = x_ref[...]                                               # (tm, Kin) bf16
    feats = jnp.dot(x, wbb_ref[...], preferred_element_type=jnp.float32)
    feats = jnp.maximum(feats + bbb_ref[...], 0.0)               # (tm, F) f32

    heads = jnp.dot(feats.astype(wh_ref.dtype), wh_ref[...],
                    preferred_element_type=jnp.float32) + bh_ref[...]   # (tm, 128)
    raw = heads[:, :DESCRIPTOR_DIM]                              # (tm, 32)
    logits = heads[:, DESCRIPTOR_DIM:DESCRIPTOR_DIM + N_DET]     # (tm, 65)

    # channel softmax over the 65 detector channels (lane-axis reduction).
    # Exact divide so keypoint ranking matches the reference (no approx recip).
    m = jnp.max(logits, axis=-1, keepdims=True)
    e = jnp.exp(logits - m)
    prob = e / jnp.sum(e, axis=-1, keepdims=True)

    # descriptor L2 normalisation (lane-axis reduction, EUP rsqrt)
    inv = jax.lax.rsqrt(jnp.sum(raw * raw, axis=-1, keepdims=True) + 1e-12)
    coarse = raw * inv

    # Single lane-dense (tm, 256) store: [feats|raw|coarse|logits|prob|pad].
    pad = jnp.zeros((x.shape[0], SLAB_W - _SLAB_USED), jnp.float32)
    slab_ref[...] = jnp.concatenate([feats, raw, coarse, logits, prob, pad],
                                    axis=-1)


def fused_extractor_heads(patches, w_bb, b_bb, w_head, b_head):
    """patches:[M,Kin] -> packed slab [M, 256] (see _OFF_* for the column layout)."""
    M, Kin = patches.shape
    F = w_bb.shape[1]

    if M <= 256:
        tm = M                                           # single step is fine
    else:
        # >=2 grid steps so v7x's two TensorCores both run; bigger tiles for
        # large M amortise the ~0.35us/step overhead (v5e/v6e especially).
        tm = min(1024, ((pl.cdiv(M, 2) + 7) // 8) * 8)
    grid = (pl.cdiv(M, tm),)

    x = patches.astype(jnp.bfloat16)
    wbb = w_bb.astype(jnp.bfloat16)
    wh = w_head.astype(jnp.bfloat16)

    cost = pl.CostEstimate(
        flops=2 * M * Kin * F + 2 * M * F * N_HEAD,
        transcendentals=M * N_DET,
        bytes_accessed=(M * Kin + Kin * F + F * N_HEAD) * 2 + M * SLAB_W * 4,
    )

    return pl.pallas_call(
        _fused_extractor_kernel,
        out_shape=jax.ShapeDtypeStruct((M, SLAB_W), jnp.float32),
        grid=grid,
        in_specs=[
            pl.BlockSpec((tm, Kin), lambda i: (i, 0)),
            pl.BlockSpec((Kin, F), lambda i: (0, 0)),
            pl.BlockSpec((1, F), lambda i: (0, 0)),
            pl.BlockSpec((F, N_HEAD), lambda i: (0, 0)),
            pl.BlockSpec((1, N_HEAD), lambda i: (0, 0)),
        ],
        out_specs=pl.BlockSpec((tm, SLAB_W), lambda i: (i, 0)),
        compiler_params=pltpu.CompilerParams(
            dimension_semantics=("parallel",)),
        cost_estimate=cost,
    )(x, wbb, b_bb, wh, b_head)


# ----------------------------------------------------------------------------
# Matcher kernels: dual log-softmax with lane-axis-only reductions
# ----------------------------------------------------------------------------

def _matcher_colstats_kernel(d1_ref, d0_ref, clz_ref, m_scr, l_scr, *,
                             inv_temp, n_total, tnc):
    # Per-key (column of s = d0 @ d1^T) log-partition over the N query axis,
    # accumulated as an online logsumexp across N chunks on the trailing
    # "arbitrary" grid axis -> no (tile, N) intermediate is ever live.
    k = pl.program_id(2)

    @pl.when(k == 0)
    def _():
        m_scr[...] = jnp.full_like(m_scr, -jnp.inf)
        l_scr[...] = jnp.zeros_like(l_scr)

    d1 = d1_ref[0]                                               # (tmc, D)
    d0 = d0_ref[0]                                               # (tnc, D)
    sT = jax.lax.dot_general(d1, d0, (((1,), (1,)), ((), ())),
                             preferred_element_type=jnp.float32) * inv_temp
    if n_total % tnc != 0:                                       # mask ragged last chunk
        col = k * tnc + jax.lax.broadcasted_iota(jnp.int32, sT.shape, 1)
        sT = jnp.where(col < n_total, sT, -jnp.inf)

    m_prev = m_scr[...]
    m_new = jnp.maximum(m_prev, jnp.max(sT, axis=-1, keepdims=True))
    l_scr[...] = (jnp.exp(m_prev - m_new) * l_scr[...]
                  + jnp.sum(jnp.exp(sT - m_new), axis=-1, keepdims=True))
    m_scr[...] = m_new

    @pl.when(k == pl.num_programs(2) - 1)
    def _():
        clz_ref[0] = m_scr[...] + jnp.log(l_scr[...])


def _matcher_sim_kernel(d0_ref, d1_ref, clz_ref, sim_ref, la_ref, *, inv_temp):
    d0 = d0_ref[0]                                               # (tn, D)
    d1 = d1_ref[0]                                               # (M, D)
    sim = jax.lax.dot_general(d0, d1, (((1,), (1,)), ((), ())),
                              preferred_element_type=jnp.float32)   # (tn, M) f32
    sim_ref[0] = sim.astype(sim_ref.dtype)                       # bf16 writeback
    s = sim * inv_temp
    mr = jnp.max(s, axis=-1, keepdims=True)
    lse_r = jnp.log(jnp.sum(jnp.exp(s - mr), axis=-1, keepdims=True))
    # dual log-softmax: row log-softmax + column log-softmax (broadcast (1, M))
    la_ref[0] = (s - (mr + lse_r)) + (s - clz_ref[0])


def pallas_matcher(desc0, desc1, inv_temp):
    """desc0:[B,N,D], desc1:[B,M,D] -> (similarity bf16 [B,N,M], log_assign f32 [B,N,M])."""
    B, N, D = desc0.shape
    M = desc1.shape[1]
    d0 = desc0.astype(jnp.bfloat16)
    d1 = desc1.astype(jnp.bfloat16)

    cap = _vmem_capacity_bytes()                      # 64 MiB (v7x) / 128 MiB (v5e/v6e)
    work_budget = (cap * 9) // 16                     # ~36 MiB on v7x, ~72 MiB otherwise
    vmem_limit = int(min(cap - (12 << 20), work_budget + (12 << 20)))

    # ---- Pass 1: per-column log-partition (tiled over M keys, online LSE over N).
    tmc = M if M <= 512 else 512
    tnc = N if N <= 512 else 512
    col_logz = pl.pallas_call(
        functools.partial(_matcher_colstats_kernel,
                          inv_temp=inv_temp, n_total=N, tnc=tnc),
        out_shape=jax.ShapeDtypeStruct((B, M, 1), jnp.float32),
        grid=(B, pl.cdiv(M, tmc), pl.cdiv(N, tnc)),
        in_specs=[
            pl.BlockSpec((1, tmc, D), lambda b, j, k: (b, j, 0)),
            pl.BlockSpec((1, tnc, D), lambda b, j, k: (b, k, 0)),
        ],
        out_specs=pl.BlockSpec((1, tmc, 1), lambda b, j, k: (b, j, 0)),
        scratch_shapes=[pltpu.VMEM((tmc, 1), jnp.float32),
                        pltpu.VMEM((tmc, 1), jnp.float32)],
        compiler_params=pltpu.CompilerParams(
            dimension_semantics=("parallel", "parallel", "arbitrary"),
            vmem_limit_bytes=32 * 1024 * 1024),
        cost_estimate=pl.CostEstimate(
            flops=2 * B * M * N * D, transcendentals=B * M * N,
            bytes_accessed=B * (M + N) * D * 2 + B * M * 4),
    )(d1, d0)
    # (B, M, 1) -> (B, 1, M) is a contiguity-preserving relabel in the wrapper.
    # TODO(synk): emit lane-dense (B, M) directly via an in-kernel transpose.
    col_logz = col_logz.reshape(B, 1, M)

    # ---- Pass 2: similarity + dual log-softmax, row tile derived from VMEM budget.
    # Per-step bytes ~ 2x double-buffered outs (4+2 B/elt) + ~3 live (tn,M) f32.
    tn = work_budget // max(26 * M, 1)
    tn = max(8, min(512, tn))
    if tn >= N:
        tn = N
    else:
        tn = max(8, (tn // 8) * 8)
    if B * pl.cdiv(N, tn) < 2 and N >= 16:
        # guarantee >=2 grid steps so both v7x TensorCores run
        tn = max(8, ((pl.cdiv(N, 2) + 7) // 8) * 8)

    sim, la = pl.pallas_call(
        functools.partial(_matcher_sim_kernel, inv_temp=inv_temp),
        out_shape=(
            jax.ShapeDtypeStruct((B, N, M), jnp.bfloat16),   # inspection-only -> bf16
            jax.ShapeDtypeStruct((B, N, M), jnp.float32),
        ),
        grid=(B, pl.cdiv(N, tn)),
        in_specs=[
            pl.BlockSpec((1, tn, D), lambda b, i: (b, i, 0)),
            pl.BlockSpec((1, M, D), lambda b, i: (b, 0, 0)),
            pl.BlockSpec((1, 1, M), lambda b, i: (b, 0, 0)),
        ],
        out_specs=(
            pl.BlockSpec((1, tn, M), lambda b, i: (b, i, 0)),
            pl.BlockSpec((1, tn, M), lambda b, i: (b, i, 0)),
        ),
        compiler_params=pltpu.CompilerParams(
            dimension_semantics=("parallel", "parallel"),
            vmem_limit_bytes=vmem_limit),
        cost_estimate=pl.CostEstimate(
            flops=2 * B * N * M * D, transcendentals=2 * B * N * M,
            bytes_accessed=B * (N + M) * D * 2 + B * N * M * 6 + B * M * 4),
    )(d0, d1, col_logz)
    return sim, la


# ----------------------------------------------------------------------------
# Keypoint extractor (SuperPoint-style) built on the fused kernel
# ----------------------------------------------------------------------------

def init_extractor_params(key, in_channels):
    k = jax.random.split(key, 6)
    kin = in_channels * CELL * CELL

    def lin(kw, kb, fan_in, fan_out):
        w = jax.random.normal(kw, (fan_in, fan_out), jnp.float32) / jnp.sqrt(fan_in)
        b = jax.random.normal(kb, (1, fan_out), jnp.float32) * 0.01
        return w, b

    w_bb, b_bb = lin(k[0], k[1], kin, FEAT_CHANNELS)
    w_det, b_det = lin(k[2], k[3], FEAT_CHANNELS, N_DET)
    w_desc, b_desc = lin(k[4], k[5], FEAT_CHANNELS, DESCRIPTOR_DIM)
    return dict(w_bb=w_bb, b_bb=b_bb, w_det=w_det, b_det=b_det,
                w_desc=w_desc, b_desc=b_desc)


def extract_keypoints(x, params, mask=None):
    """x: [B, C, H, W] (NCHW).  Returns the feats dict described by the PyTorch module."""
    del mask  # TODO(synk): padding masks of the original extractor are not modelled
    B, C, H, W = x.shape
    Hc, Wc = H // CELL, W // CELL
    D = DESCRIPTOR_DIM
    F = FEAT_CHANNELS

    # 8x8 space-to-depth -> tokens x (C*64)
    patches = x.reshape(B, C, Hc, CELL, Wc, CELL)
    patches = patches.transpose(0, 2, 4, 1, 3, 5).reshape(B * Hc * Wc, C * CELL * CELL)

    # fused head weights: [descriptor(32) | detector(65) | zero pad to 128]
    pad_cols = N_HEAD - DESCRIPTOR_DIM - N_DET
    w_head = jnp.concatenate(
        [params['w_desc'], params['w_det'], jnp.zeros((F, pad_cols), jnp.float32)], axis=1)
    b_head = jnp.concatenate(
        [params['b_desc'], params['b_det'], jnp.zeros((1, pad_cols), jnp.float32)], axis=1)

    slab = fused_extractor_heads(patches, params['w_bb'], params['b_bb'], w_head, b_head)
    feats_flat = slab[:, _OFF_FEATS:_OFF_FEATS + F]
    raw_flat = slab[:, _OFF_RAW:_OFF_RAW + D]
    coarse_flat = slab[:, _OFF_COARSE:_OFF_COARSE + D]
    logits_flat = slab[:, _OFF_LOGITS:_OFF_LOGITS + N_DET]
    prob_flat = slab[:, _OFF_PROB:_OFF_PROB + N_DET]

    backbone_feats = feats_flat.reshape(B, Hc, Wc, F).transpose(0, 3, 1, 2)
    logits = logits_flat.reshape(B, Hc, Wc, N_DET).transpose(0, 3, 1, 2)
    probability = prob_flat.reshape(B, Hc, Wc, N_DET).transpose(0, 3, 1, 2)
    raw_descriptors = raw_flat.reshape(B, Hc, Wc, D).transpose(0, 3, 1, 2)
    coarse_descriptors = coarse_flat.reshape(B, Hc, Wc, D).transpose(0, 3, 1, 2)

    # keypoint score: drop dustbin channel, pixel-shuffle to full resolution
    p64 = prob_flat.reshape(B, Hc, Wc, N_DET)[..., :64]
    score_hw = p64.reshape(B, Hc, Wc, CELL, CELL).transpose(0, 1, 3, 2, 4).reshape(B, H, W)
    score = score_hw[:, None]  # [B, 1, H, W]

    # 3x3 NMS (glue)
    padded = jnp.pad(score_hw, ((0, 0), (1, 1), (1, 1)), constant_values=-jnp.inf)
    local_max = score_hw
    for di in (-1, 0, 1):
        for dj in (-1, 0, 1):
            local_max = jnp.maximum(local_max,
                                    padded[:, 1 + di:1 + di + H, 1 + dj:1 + dj + W])
    nms = jnp.where(score_hw >= local_max, score_hw, 0.0)  # [B, H, W]

    # dense descriptors: nearest x8 upsample of already-unit-norm coarse descriptors
    # (replication preserves unit norm -> no re-normalisation needed).
    # TODO(synk): the original extractor may use bilinear interpolation + renorm.
    up = coarse_flat.reshape(B, Hc, 1, Wc, 1, D)
    up = jnp.broadcast_to(up, (B, Hc, CELL, Wc, CELL, D)).reshape(B, H, W, D)
    normalized_descriptors = up.transpose(0, 3, 1, 2)           # [B, D, H, W]
    dense_descriptors = up.reshape(B, H * W, D)                  # [B, H*W, D]

    # dense positions (x, y, score)
    ys, xs = jnp.meshgrid(jnp.arange(H), jnp.arange(W), indexing='ij')
    pos_xy = jnp.stack([xs.reshape(-1), ys.reshape(-1)], axis=-1).astype(jnp.float32)
    pos_xy_b = jnp.broadcast_to(pos_xy[None], (B, H * W, 2))
    score_flat = score_hw.reshape(B, H * W)
    dense_positions = jnp.concatenate([pos_xy_b, score_flat[..., None]], axis=-1)

    # sparse keypoints via fixed-K top-k on the NMS map (glue)
    topv, topi = jax.lax.top_k(nms.reshape(B, H * W), TOPK)
    sp_xy = jnp.take_along_axis(pos_xy_b, topi[..., None], axis=1)
    sparse_positions_arr = jnp.concatenate([sp_xy, topv[..., None]], axis=-1)
    sparse_descriptors_arr = jnp.take_along_axis(dense_descriptors, topi[..., None], axis=1)

    return dict(
        image_size=(H, W),
        backbone_feats=backbone_feats,
        logits=logits,
        raw_descriptors=raw_descriptors,
        probability=probability,
        score=score,
        nms=nms,
        coarse_descriptors=coarse_descriptors,
        normalized_descriptors=normalized_descriptors,
        dense_descriptors=dense_descriptors,
        sparse_descriptors=tuple(sparse_descriptors_arr[b] for b in range(B)),
        sparse_positions=tuple(sparse_positions_arr[b] for b in range(B)),
        dense_positions=dense_positions,
    )


# ----------------------------------------------------------------------------
# Matcher (dense dual-softmax matching) built on the Pallas matcher kernels
# ----------------------------------------------------------------------------

def match_features(feats0, feats1, bin_score=-2.0):
    # TODO(synk): matching over dense descriptors is quadratic in H*W; a
    # production matcher would operate on the TOPK sparse keypoints instead.
    d0 = feats0['dense_descriptors']   # [B, N, D]
    d1 = feats1['dense_descriptors']   # [B, M, D]
    B, N, D = d0.shape
    M = d1.shape[1]
    inv_temp = 1.0 / math.sqrt(D)

    similarity, la_inner = pallas_matcher(d0, d1, inv_temp)   # sim bf16, la f32

    # full (N+1, M+1) log-assignment with constant dustbin scores
    log_assignment = jnp.full((B, N + 1, M + 1), bin_score, jnp.float32)
    log_assignment = log_assignment.at[:, :N, :M].set(la_inner)

    # mutual nearest-neighbour matching (glue)
    m0 = jnp.argmax(la_inner, axis=2)                 # [B, N]
    m1 = jnp.argmax(la_inner, axis=1)                 # [B, M]
    s0 = jnp.exp(jnp.max(la_inner, axis=2))
    s1 = jnp.exp(jnp.max(la_inner, axis=1))
    mutual0 = jnp.take_along_axis(m1, m0, axis=1) == jnp.arange(N)[None]
    mutual1 = jnp.take_along_axis(m0, m1, axis=1) == jnp.arange(M)[None]
    matches0 = jnp.where(mutual0, m0, -1)
    matches1 = jnp.where(mutual1, m1, -1)
    matching_scores0 = jnp.where(mutual0, s0, 0.0)
    matching_scores1 = jnp.where(mutual1, s1, 0.0)

    pos0 = feats0['dense_positions']
    pos1 = feats1['dense_positions']
    matched_kpts0 = jnp.where(mutual0[..., None], pos0, -1.0)
    matched_kpts1 = jnp.where(mutual1[..., None], pos1, -1.0)

    return dict(
        matches0=matches0,
        matches1=matches1,
        matching_scores0=matching_scores0,
        matching_scores1=matching_scores1,
        matched_kpts0=matched_kpts0,
        matched_kpts1=matched_kpts1,
        similarity=similarity,            # bf16 (inspection-only; halves writeback)
        log_assignment=log_assignment,
    )


# ----------------------------------------------------------------------------
# EIM forward
# ----------------------------------------------------------------------------

def eim_forward(events, image, event_params, image_params,
                events_mask=None, image_mask=None):
    events_feats = extract_keypoints(events, event_params, events_mask)
    image_feats = extract_keypoints(image, image_params, image_mask)
    matches = match_features(events_feats, image_feats)
    return events_feats, image_feats, matches


if __name__ == "__main__":
    key = jax.random.PRNGKey(0)
    k_ev, k_im, k_pe, k_pi = jax.random.split(key, 4)

    B, H, W = 2, 16, 16
    C_EVENTS, C_IMAGE = 2, 1
    events = jax.random.normal(k_ev, (B, C_EVENTS, H, W), jnp.float32)
    image = jax.random.normal(k_im, (B, C_IMAGE, H, W), jnp.float32)

    event_params = init_extractor_params(k_pe, C_EVENTS)
    image_params = init_extractor_params(k_pi, C_IMAGE)

    events_feats, image_feats, matches = eim_forward(
        events, image, event_params, image_params)

    jax.block_until_ready(events_feats['probability'])
    jax.block_until_ready(image_feats['dense_descriptors'])
    jax.block_until_ready(matches['log_assignment'])

    # light sanity checks on documented shapes / values
    assert events_feats['backbone_feats'].shape == (B, FEAT_CHANNELS, H // 8, W // 8)
    assert events_feats['logits'].shape == (B, 65, H // 8, W // 8)
    assert events_feats['score'].shape == (B, 1, H, W)
    assert events_feats['normalized_descriptors'].shape == (B, DESCRIPTOR_DIM, H, W)
    assert events_feats['dense_descriptors'].shape == (B, H * W, DESCRIPTOR_DIM)
    assert image_feats['probability'].shape == (B, 65, H // 8, W // 8)
    assert matches['log_assignment'].shape == (B, H * W + 1, H * W + 1)
    assert matches['similarity'].shape == (B, H * W, H * W)
    assert bool(jnp.all(jnp.isfinite(matches['log_assignment'])))
    assert bool(jnp.all(jnp.isfinite(events_feats['probability'])))
    assert bool(jnp.allclose(jnp.sum(events_feats['probability'], axis=1), 1.0, atol=1e-3))

    print("KERNEL_OK")
</pallas_src>

<mosaic_0001>
module attributes {stable_mosaic.version = 11 : i64} {
  func.func @_fused_extractor_kernel(%arg0: i32, %arg1: memref<8x128xbf16, #tpu.memory_space<vmem>>, %arg2: memref<128x32xbf16, #tpu.memory_space<vmem>>, %arg3: memref<1x32xf32, #tpu.memory_space<vmem>>, %arg4: memref<32x128xbf16, #tpu.memory_space<vmem>>, %arg5: memref<1x128xf32, #tpu.memory_space<vmem>>, %arg6: memref<8x256xf32, #tpu.memory_space<vmem>>) attributes {dimension_semantics = [#tpu.dimension_semantics<parallel>], iteration_bounds = array<i64: 1>, scalar_prefetch = 0 : i64, scratch_operands = 0 : i64, tpu.core_type = #tpu.core_type<tc>, window_params = [{transform_indices = @transform_0, window_bounds = array<i64: 8, 128>}, {pipeline_mode = #tpu.pipeline_mode<synchronous>, transform_indices = @transform_1, window_bounds = array<i64: 128, 32>}, {pipeline_mode = #tpu.pipeline_mode<synchronous>, transform_indices = @transform_2, window_bounds = array<i64: 1, 32>}, {pipeline_mode = #tpu.pipeline_mode<synchronous>, transform_indices = @transform_3, window_bounds = array<i64: 32, 128>}, {pipeline_mode = #tpu.pipeline_mode<synchronous>, transform_indices = @transform_4, window_bounds = array<i64: 1, 128>}, {transform_indices = @transform_5, window_bounds = array<i64: 8, 256>}]} {
    %c0 = arith.constant 0 : index
    %c0_0 = arith.constant 0 : index
    %0 = vector.load %arg1[%c0, %c0_0] : memref<8x128xbf16, #tpu.memory_space<vmem>>, vector<8x128xbf16>
    %c0_1 = arith.constant 0 : index
    %c0_2 = arith.constant 0 : index
    %1 = vector.load %arg2[%c0_1, %c0_2] : memref<128x32xbf16, #tpu.memory_space<vmem>>, vector<128x32xbf16>
    %cst = arith.constant dense<0.000000e+00> : vector<8x32xf32>
    %2 = tpu.matmul %0, %1, %cst {dimension_numbers = #tpu.dot_dimension_numbers<[1], [0], [0], [1], [0, 0, 1, 1], [], []>} : vector<8x128xbf16>, vector<128x32xbf16>, vector<8x32xf32> -> vector<8x32xf32>
    %c0_3 = arith.constant 0 : index
    %c0_4 = arith.constant 0 : index
    %3 = vector.load %arg3[%c0_3, %c0_4] : memref<1x32xf32, #tpu.memory_space<vmem>>, vector<1x32xf32>
    %4 = vector.broadcast %3 : vector<1x32xf32> to vector<8x32xf32>
    %5 = arith.addf %2, %4 : vector<8x32xf32>
    %cst_5 = arith.constant 0.000000e+00 : f32
    %6 = vector.broadcast %cst_5 : f32 to vector<8x32xf32>
    %7 = arith.maximumf %5, %6 : vector<8x32xf32>
    %8 = arith.truncf %7 : vector<8x32xf32> to vector<8x32xbf16>
    %c0_6 = arith.constant 0 : index
    %c0_7 = arith.constant 0 : index
    %9 = vector.load %arg4[%c0_6, %c0_7] : memref<32x128xbf16, #tpu.memory_space<vmem>>, vector<32x128xbf16>
    %cst_8 = arith.constant dense<0.000000e+00> : vector<8x128xf32>
    %10 = tpu.matmul %8, %9, %cst_8 {dimension_numbers = #tpu.dot_dimension_numbers<[1], [0], [0], [1], [0, 0, 1, 1], [], []>} : vector<8x32xbf16>, vector<32x128xbf16>, vector<8x128xf32> -> vector<8x128xf32>
    %c0_9 = arith.constant 0 : index
    %c0_10 = arith.constant 0 : index
    %11 = vector.load %arg5[%c0_9, %c0_10] : memref<1x128xf32, #tpu.memory_space<vmem>>, vector<1x128xf32>
    %12 = vector.broadcast %11 : vector<1x128xf32> to vector<8x128xf32>
    %13 = arith.addf %10, %12 : vector<8x128xf32>
    %14 = vector.extract_strided_slice %13 {offsets = [0, 0], sizes = [8, 32], strides = [1, 1]} : vector<8x128xf32> to vector<8x32xf32>
    %15 = vector.extract_strided_slice %13 {offsets = [0, 32], sizes = [8, 65], strides = [1, 1]} : vector<8x128xf32> to vector<8x65xf32>
    %cst_11 = arith.constant dense<0xFF800000> : vector<8xf32>
    %16 = vector.multi_reduction <maximumf>, %15, %cst_11 [1] : vector<8x65xf32> to vector<8xf32>
    %17 = vector.shape_cast %16 : vector<8xf32> to vector<8x1xf32>
    %18 = vector.broadcast %17 : vector<8x1xf32> to vector<8x65xf32>
    %19 = arith.subf %15, %18 : vector<8x65xf32>
    %20 = math.exp %19 : vector<8x65xf32>
    %cst_12 = arith.constant dense<0.000000e+00> : vector<8xf32>
    %21 = vector.multi_reduction <add>, %20, %cst_12 [1] : vector<8x65xf32> to vector<8xf32>
    %22 = vector.shape_cast %21 : vector<8xf32> to vector<8x1xf32>
    %23 = vector.broadcast %22 : vector<8x1xf32> to vector<8x65xf32>
    %24 = arith.divf %20, %23 : vector<8x65xf32>
    %25 = arith.mulf %14, %14 : vector<8x32xf32>
    %cst_13 = arith.constant dense<0.000000e+00> : vector<8xf32>
    %26 = vector.multi_reduction <add>, %25, %cst_13 [1] : vector<8x32xf32> to vector<8xf32>
    %27 = vector.shape_cast %26 : vector<8xf32> to vector<8x1xf32>
    %cst_14 = arith.constant 9.99999996E-13 : f32
    %28 = vector.broadcast %cst_14 : f32 to vector<8x1xf32>
    %29 = arith.addf %27, %28 : vector<8x1xf32>
    %30 = math.rsqrt %29 : vector<8x1xf32>
    %31 = vector.broadcast %30 : vector<8x1xf32> to vector<8x32xf32>
    %32 = arith.mulf %14, %31 : vector<8x32xf32>
    %cst_15 = arith.constant 0.000000e+00 : f32
    %33 = vector.broadcast %cst_15 : f32 to vector<8x30xf32>
    %34 = tpu.concatenate %7, %14, %32, %15, %24, %33 in 1 : vector<8x32xf32>, vector<8x32xf32>, vector<8x32xf32>, vector<8x65xf32>, vector<8x65xf32>, vector<8x30xf32> -> vector<8x256xf32>
    %c0_16 = arith.constant 0 : index
    %c0_17 = arith.constant 0 : index
    %35 = vector.load %arg6[%c0_16, %c0_17] : memref<8x256xf32, #tpu.memory_space<vmem>>, vector<8x256xf32>
    tpu.vector_store %arg6[%c0_16, %c0_17], %34 {strides = array<i32>} : memref<8x256xf32, #tpu.memory_space<vmem>>, vector<8x256xf32>,
    return
  }
  func.func @transform_0(%arg0: i32) -> (i32, i32) {
    %c0_i32 = arith.constant 0 : i32
    %c0_i32_0 = arith.constant 0 : i32
    return %arg0, %c0_i32 : i32, i32
  }
  func.func @transform_1(%arg0: i32) -> (i32, i32) {
    %c0_i32 = arith.constant 0 : i32
    %c0_i32_0 = arith.constant 0 : i32
    %c0_i32_1 = arith.constant 0 : i32
    return %c0_i32, %c0_i32_0 : i32, i32
  }
  func.func @transform_2(%arg0: i32) -> (i32, i32) {
    %c0_i32 = arith.constant 0 : i32
    %c0_i32_0 = arith.constant 0 : i32
    %c0_i32_1 = arith.constant 0 : i32
    return %c0_i32, %c0_i32_0 : i32, i32
  }
  func.func @transform_3(%arg0: i32) -> (i32, i32) {
    %c0_i32 = arith.constant 0 : i32
    %c0_i32_0 = arith.constant 0 : i32
    %c0_i32_1 = arith.constant 0 : i32
    return %c0_i32, %c0_i32_0 : i32, i32
  }
  func.func @transform_4(%arg0: i32) -> (i32, i32) {
    %c0_i32 = arith.constant 0 : i32
    %c0_i32_0 = arith.constant 0 : i32
    %c0_i32_1 = arith.constant 0 : i32
    return %c0_i32, %c0_i32_0 : i32, i32
  }
  func.func @transform_5(%arg0: i32) -> (i32, i32) {
    %c0_i32 = arith.constant 0 : i32
    %c0_i32_0 = arith.constant 0 : i32
    return %arg0, %c0_i32 : i32, i32
  }
}

</mosaic_0001>

<llo_original>
// kernel: tpu_custom_call.1
$region0: #{tpu_custom_call.1}
  #allocation0 [shape = 'u32[]', space=smem, size = 0x4, offset = 0x4, fixed_abs, tag = 'smem constant byte address 0x4 - core index']
  #allocation1 [shape = 'u32[144,128]{1,0:T(1,128)}', space=vmem, size = 0x12000, scoped, tag = 'internal scratch']
  %s0 = inlined_call_operand.vmem [shape: bf16[8,128], index: 0, kind: input, shape index: {}]
  %s1 = inlined_call_operand.vmem [shape: bf16[128,32], index: 1, kind: input, shape index: {}]
  %s2 = inlined_call_operand.vmem [shape: f32[1,32], index: 2, kind: input, shape index: {}]
  %s3 = inlined_call_operand.vmem [shape: bf16[32,128], index: 3, kind: input, shape index: {}]
  %s4 = inlined_call_operand.vmem [shape: f32[1,128], index: 4, kind: input, shape index: {}]
  %s5 = inlined_call_operand.hbm [shape: f32[8,256], index: 5, kind: output, shape index: {}]
  %s6 = sld [smem:[#allocation0]]
  $region30: #{tpu_custom_call.1} parent=0
    _
  %s8 = ssub.s32 1, %s6
  %s9 = scalar_select 0, %s8, %s6
  $region1: #{tpu_custom_call.1} parent=0
    #allocation2 [shape = 'u8[8192]{0}', space=vmem, size = 0x2000, scoped, tag = 'output window, operand 0, single buffered']
    #allocation3 [shape = 's32[1]{0}', space=sflag, size = 0x4, scoped, tag = 'scoped memory for tpu_custom_call.1']
    %10 = vsyncpa [#allocation3], 0
    // Predicated region
    $region2: #{tpu_custom_call.1} parent=1 // pred_check
      _
    $region3: #{tpu_custom_call.1} parent=1 // pred_check_branch
      %12 = sbr.rel (0) target = $region5
    $region4: #{tpu_custom_call.1} parent=1 // pred_region
      _
    $region5: #{tpu_custom_call.1} parent=1 // pred_fallthru
      _
    // Predicated region
    $region6: #{tpu_custom_call.1} parent=1 // pred_check
      _
    $region7: #{tpu_custom_call.1} parent=1 // pred_check_branch
      %14 = sbr.rel (0) target = $region9
    $region8: #{tpu_custom_call.1} parent=1 // pred_region
      _
    $region9: #{tpu_custom_call.1} parent=1 // pred_fallthru
      _
    // Predicated region
    $region10: #{tpu_custom_call.1} parent=1 // pred_check
      _
    $region11: #{tpu_custom_call.1} parent=1 // pred_check_branch
      %16 = sbr.rel (0) target = $region13
    $region12: #{tpu_custom_call.1} parent=1 // pred_region
      _
    $region13: #{tpu_custom_call.1} parent=1 // pred_fallthru
      _
    // Predicated region
    $region14: #{tpu_custom_call.1} parent=1 // pred_check
      _
    $region15: #{tpu_custom_call.1} parent=1 // pred_check_branch
      %18 = sbr.rel (0) target = $region17
    $region16: #{tpu_custom_call.1} parent=1 // pred_region
      _
    $region17: #{tpu_custom_call.1} parent=1 // pred_fallthru
      _
    // Predicated region
    $region18: #{tpu_custom_call.1} parent=1 // pred_check
      _
    $region19: #{tpu_custom_call.1} parent=1 // pred_check_branch
      %20 = sbr.rel (0) target = $region21
    $region20: #{tpu_custom_call.1} parent=1 // pred_region
      _
    $region21: #{tpu_custom_call.1} parent=1 // pred_fallthru
      _
    %v22 = vld [vmem:[%s0] sm:$0xf]
    %v23 = vld [vmem:[%s1] sm:$0xf]
    %v24 = vld [vmem:[%s1 + $0x4] sm:$0xf]
    %v25 = vld [vmem:[%s1 + $0x8] sm:$0xf]
    %v26 = vld [vmem:[%s1 + $0xc] sm:$0xf]
    %v27 = vld [vmem:[%s1 + $0x10] sm:$0xf]
    %v28 = vld [vmem:[%s1 + $0x14] sm:$0xf]
    %v29 = vld [vmem:[%s1 + $0x18] sm:$0xf]
    %v30 = vld [vmem:[%s1 + $0x1c] sm:$0xf]
    %v31 = vld [vmem:[%s1 + $0x20] sm:$0xf]
    %v32 = vld [vmem:[%s1 + $0x24] sm:$0xf]
    %v33 = vld [vmem:[%s1 + $0x28] sm:$0xf]
    %v34 = vld [vmem:[%s1 + $0x2c] sm:$0xf]
    %v35 = vld [vmem:[%s1 + $0x30] sm:$0xf]
    %v36 = vld [vmem:[%s1 + $0x34] sm:$0xf]
    %v37 = vld [vmem:[%s1 + $0x38] sm:$0xf]
    %v38 = vld [vmem:[%s1 + $0x3c] sm:$0xf]
    %v39 = vld [vmem:[%s2] sm:$0x1]
    %v41 = vlaneseq
    %v42 = vshrl.u32 %v41, 7
    %v43 = vsub.s32 0, %v42
    %v44 = vrot.slane %v39, %v43
    %v62 = vunpack.c.l.b16 %v23
    %v63 = vunpack.c.l.b16 %v24
    %v64 = vunpack.c.l.b16 %v25
    %v65 = vunpack.c.l.b16 %v26
    %v66 = vunpack.c.l.b16 %v27
    %v67 = vunpack.c.l.b16 %v28
    %v68 = vunpack.c.l.b16 %v29
    %v69 = vunpack.c.l.b16 %v30
    %v70 = vunpack.c.l.b16 %v31
    %v71 = vunpack.c.l.b16 %v32
    %v72 = vunpack.c.l.b16 %v33
    %v73 = vunpack.c.l.b16 %v34
    %v74 = vunpack.c.l.b16 %v35
    %v75 = vunpack.c.l.b16 %v36
    %v76 = vunpack.c.l.b16 %v37
    %v77 = vunpack.c.l.b16 %v38
    %v78 = vpack.c.b16 %v63, %v62
    %v79 = vpack.c.b16 %v65, %v64
    %v80 = vpack.c.b16 %v67, %v66
    %v81 = vpack.c.b16 %v69, %v68
    %v82 = vpack.c.b16 %v71, %v70
    %v83 = vpack.c.b16 %v73, %v72
    %v84 = vpack.c.b16 %v75, %v74
    %v85 = vpack.c.b16 %v77, %v76
    %94 = vmatprep.subr.bf16.mxu0 0
    %95 = vmatpush1.bf16.msra.mxu0 %v78
    %96 = vmatprep.subr.bf16.mxu0 0
    %97 = vmatpush1.bf16.msra.mxu0 %v79
    %98 = vmatprep.subr.bf16.mxu0 0
    %99 = vmatpush1.bf16.msra.mxu0 %v80
    %100 = vmatprep.subr.bf16.mxu0 0
    %101 = vmatpush1.bf16.msra.mxu0 %v81
    %102 = vmatprep.subr.bf16.mxu0 0
    %103 = vmatpush1.bf16.msra.mxu0 %v82
    %104 = vmatprep.subr.bf16.mxu0 0
    %105 = vmatpush1.bf16.msra.mxu0 %v83
    %106 = vmatprep.subr.bf16.mxu0 0
    %107 = vmatpush1.bf16.msra.mxu0 %v84
    %108 = vmatprep.subr.bf16.mxu0 0
    %109 = vmatpush1.bf16.msra.mxu0 %v85
    %110 = vmatprep.subr.bf16.mxu0 0
    %111 = vmatpush1.bf16.msra.mxu0 0
    %112 = vmatprep.subr.bf16.mxu0 0
    %113 = vmatpush1.bf16.msra.mxu0 0
    %114 = vmatprep.subr.bf16.mxu0 0
    %115 = vmatpush1.bf16.msra.mxu0 0
    %116 = vmatprep.subr.bf16.mxu0 0
    %117 = vmatpush1.bf16.msra.mxu0 0
    %118 = vmatprep.subr.bf16.mxu0 0
    %119 = vmatpush1.bf16.msra.mxu0 0
    %120 = vmatprep.subr.bf16.mxu0 0
    %121 = vmatpush1.bf16.msra.mxu0 0
    %122 = vmatprep.subr.bf16.mxu0 0
    %123 = vmatpush1.bf16.msra.mxu0 0
    %124 = vmatprep.subr.bf16.mxu0 0
    %125 = vmatpush1.bf16.msra.mxu0 0
    %126 = vmatprep.mubr.bf16.mxu0 0
    %127 = vmatmul.mubr.bf16.gmra.mrb[0].mxu0 %v22
    %v128 = vpop.f32.mrb[0].mxu0
    %v129 = vadd.f32 %v44, %v128
    %v130 = vpop.f32.mrb[0].mxu0
    %v131 = vpop.f32.mrb[0].mxu0
    %v132 = vpop.f32.mrb[0].mxu0
    %133 = vdwg.mxu0
    %v134 = vmax.f32 %v129, 0.0
    %v135 = vpack.c.bf16 %v134, %v134
    %v136 = vld [vmem:[%s3] sm:$0xf]
    %v137 = vld [vmem:[%s3 + $0x4] sm:$0xf]
    %v138 = vld [vmem:[%s3 + $0x8] sm:$0xf]
    %v139 = vld [vmem:[%s3 + $0xc] sm:$0xf]
    %v140 = vld [vmem:[%s4] sm:$0x1]
    %v142 = vlaneseq
    %v143 = vshrl.u32 %v142, 7
    %v144 = vsub.s32 0, %v143
    %v145 = vrot.slane %v140, %v144
    %v151 = vunpack.c.l.b16 %v136
    %v152 = vunpack.c.l.b16 %v137
    %v153 = vunpack.c.l.b16 %v138
    %v154 = vunpack.c.l.b16 %v139
    %v155 = vpack.c.b16 %v152, %v151
    %v156 = vpack.c.b16 %v154, %v153
    %vm159 = vcmask 261120
    %v161 = vsel %vm159, %v135, 0
    %163 = vmatprep.subr.bf16.mxu0 0
    %164 = vmatpush1.bf16.msra.mxu0 %v155
    %165 = vmatprep.subr.bf16.mxu0 0
    %166 = vmatpush1.bf16.msra.mxu0 %v156
    %167 = vmatprep.subr.bf16.mxu0 0
    %168 = vmatpush1.bf16.msra.mxu0 0
    %169 = vmatprep.subr.bf16.mxu0 0
    %170 = vmatpush1.bf16.msra.mxu0 0
    %171 = vmatprep.subr.bf16.mxu0 0
    %172 = vmatpush1.bf16.msra.mxu0 0
    %173 = vmatprep.subr.bf16.mxu0 0
    %174 = vmatpush1.bf16.msra.mxu0 0
    %175 = vmatprep.subr.bf16.mxu0 0
    %176 = vmatpush1.bf16.msra.mxu0 0
    %177 = vmatprep.subr.bf16.mxu0 0
    %178 = vmatpush1.bf16.msra.mxu0 0
    %179 = vmatprep.subr.bf16.mxu0 0
    %180 = vmatpush1.bf16.msra.mxu0 0
    %181 = vmatprep.subr.bf16.mxu0 0
    %182 = vmatpush1.bf16.msra.mxu0 0
    %183 = vmatprep.subr.bf16.mxu0 0
    %184 = vmatpush1.bf16.msra.mxu0 0
    %185 = vmatprep.subr.bf16.mxu0 0
    %186 = vmatpush1.bf16.msra.mxu0 0
    %187 = vmatprep.subr.bf16.mxu0 0
    %188 = vmatpush1.bf16.msra.mxu0 0
    %189 = vmatprep.subr.bf16.mxu0 0
    %190 = vmatpush1.bf16.msra.mxu0 0
    %191 = vmatprep.subr.bf16.mxu0 0
    %192 = vmatpush1.bf16.msra.mxu0 0
    %193 = vmatprep.subr.bf16.mxu0 0
    %194 = vmatpush1.bf16.msra.mxu0 0
    %195 = vmatprep.mubr.bf16.mxu0 0
    %196 = vmatmul.mubr.bf16.gmra.mrb[0].mxu0 %v161
    %v197 = vpop.f32.mrb[0].mxu0
    %v198 = vadd.f32 %v145, %v197
    %v199 = vpop.f32.mrb[0].mxu0
    %v200 = vpop.f32.mrb[0].mxu0
    %v201 = vpop.f32.mrb[0].mxu0
    %202 = vdwg.mxu0
    %vm203 = vcmask 793856
    %v204 = vsel %vm203, %v198, -inf
    %205 = vmax.xlane.f32.xlu0 %v204
    %v206 = vpop.xlane.xlu0 %205
    %v207 = vsub.f32 %v198, %v206
    %v208 = vmul.f32 %v207, 1.442695
    %v209 = vpow.pop %v208
    %211 = vrot.lane.b32.xlu0 %v209, 96
    %v212 = vpop.permute.xlu0 %211
    %vm214 = vcmask 531456
    %v215 = vsel %vm214, %v212, 0.0
    %216 = vadd.xlane.f32.xlu0 %v215
    %v217 = vpop.xlane.xlu0 %216
    %v218 = vrcp.pop %v217
    %v219 = vmul.f32 %v209, %v218
    %v220 = vmul.f32 %v198, %v198
    %v221 = vsel %vm159, %v220, 0.0
    %222 = vadd.xlane.f32.xlu0 %v221
    %v223 = vpop.xlane.xlu0 %222
    %v224 = vadd.f32 %v223, 1e-12
    %v225 = vrsqrt.pop %v224
    %v226 = vmul.f32 %v198, %v225
    %228 = vrot.lane.b32.xlu0 %v198, 32
    %v229 = vpop.permute.xlu0 %228
    %232 = vrot.lane.b32.xlu0 %v226, 64
    %v233 = vpop.permute.xlu0 %232
    %235 = vrot.lane.b32.xlu0 %v198, 64
    %v236 = vpop.permute.xlu0 %235
    %239 = vrot.lane.b32.xlu0 %v219, 1
    %v240 = vpop.permute.xlu0 %239
    %v242 = vsel %vm159, %v134, %v229
    %vm243 = vcmask 523264
    %v244 = vsel %vm243, %v242, %v233
    %vm245 = vcmask 785408
    %v246 = vsel %vm245, %v244, %v236
    %vm247 = vcmask 269312
    %v248 = vsel %vm247, %v236, %v240
    %vm249 = vcmask 801792
    %v250 = vsel %vm249, %v248, 0.0
    %251 = vst [vmem:[#allocation2] sm:$0xff] %v246
    %252 = vst [vmem:[#allocation2 + $0x8] sm:$0xff] %v250
    // Predicated region
    $region22: #{tpu_custom_call.1} parent=1 // pred_check
      _
    $region23: #{tpu_custom_call.1} parent=1 // pred_check_branch
      %254 = sbr.rel (0) target = $region25
    $region24: #{tpu_custom_call.1} parent=1 // pred_region
      %s256 = ssub.s32 256, 256
      %257 = vsyncadd [#allocation3], %s256
      %s259 = sshll.u32 [#allocation2], 4
      %s260 = int_to_ptr.vmem [resolvable:$true] %s259
      %262 = dma.vmem_to_hbm [thread:$0]  %s260, 256, %s5, [#allocation3]
    $region25: #{tpu_custom_call.1} parent=1 // pred_fallthru
      _
    // Predicated region
    $region26: #{tpu_custom_call.1} parent=1 // pred_check
      _
    $region27: #{tpu_custom_call.1} parent=1 // pred_check_branch
      %264 = sbr.rel (0) target = $region29
    $region28: #{tpu_custom_call.1} parent=1 // pred_region
      %265 = dma.done [#allocation3], 256
    $region29: #{tpu_custom_call.1} parent=1 // pred_fallthru
      _
    %266 = vsyncpa [#allocation3], 1

</llo_original>
